<compile_context>
chip_gen: v7x
topology: tpu7x:2x2x1
jax: 0.10.0
libtpu: 0.0.40
codegen_flags: <defaults>
</compile_context>

<pallas_src>
import jax
import jax.numpy as jnp
from jax.experimental import pallas as pl
from jax.experimental.pallas import tpu as pltpu

IN_FEATURES = 5
OUT_FEATURES = 4
BN_EPS = 1e-5


def dummy_model_kernel(feat_ref, params_ref, logits_ref, loss_ref):
    # params_ref layout (rows): [0:5] = W^T (in,out), [5] = gamma, [6] = beta
    feat = feat_ref[...]                                   # (N, 5) f32
    n_rows = feat.shape[0]
    n_f = jnp.float32(n_rows)

    # --- Linear (bias-free; bias cancels under BN mean subtraction) on the VPU ---
    acc = feat[:, 0:1] * params_ref[0:1, :]                # (N, 4)
    for k in range(1, IN_FEATURES):                        # unrolled at trace time
        acc = acc + feat[:, k:k + 1] * params_ref[k:k + 1, :]

    gamma = params_ref[IN_FEATURES:IN_FEATURES + 1, :]     # (1, 4)
    beta = params_ref[IN_FEATURES + 1:IN_FEATURES + 2, :]  # (1, 4)

    # --- BatchNorm1d, training-mode batch statistics (biased variance) -----------
    col_sum = jnp.sum(acc, axis=0, keepdims=True)          # (1, 4)
    mean = col_sum * (1.0 / n_rows)
    centered = acc - mean
    var = jnp.sum(centered * centered, axis=0, keepdims=True) * (1.0 / n_rows)
    inv_std = jax.lax.rsqrt(var + BN_EPS)
    scale = gamma * inv_std                                # (1, 4)

    logits_ref[...] = centered * scale + beta              # (N, 4)

    # --- loss = sum(y), reusing column sums (no second full reduce of (N,4)) -----
    colsum_centered = col_sum - n_f * mean                 # ~0 per feature (exact math)
    loss_ref[0] = jnp.sum(colsum_centered * scale) + n_f * jnp.sum(beta)


def dummy_model_forward(feat, labels, params):
    """JAX wrapper mirroring DummyModel.forward(feat, labels)."""
    del labels  # unused by the forward computation (matches the PyTorch module)
    n = feat.shape[0]

    # Pack W^T, gamma, beta into one operand (could be done once at init time).
    # Linear bias is intentionally omitted: BN batch-mean subtraction cancels it.
    packed = jnp.concatenate(
        [
            params["linear_w"].T,                               # (5, 4)
            params["bn_gamma"].reshape(1, OUT_FEATURES),        # (1, 4)
            params["bn_beta"].reshape(1, OUT_FEATURES),         # (1, 4)
        ],
        axis=0,
    ).astype(jnp.float32)                                       # (7, 4)

    vmem = pl.BlockSpec(memory_space=pltpu.MemorySpace.VMEM)
    smem = pl.BlockSpec(memory_space=pltpu.MemorySpace.SMEM)

    logits, loss = pl.pallas_call(
        dummy_model_kernel,
        out_shape=(
            jax.ShapeDtypeStruct((n, OUT_FEATURES), jnp.float32),
            jax.ShapeDtypeStruct((1,), jnp.float32),
        ),
        in_specs=[vmem, vmem],
        out_specs=(vmem, smem),
    )(feat.astype(jnp.float32), packed)

    return dict(logits=logits, loss=loss[0])


def init_params(key):
    """Parameter init matching the PyTorch module's shapes (gamma/beta randomized
    here so the correctness check below is non-degenerate)."""
    k_w, k_b, k_g, k_be = jax.random.split(key, 4)
    bound = 1.0 / (IN_FEATURES ** 0.5)   # PyTorch Linear default uniform bound
    return {
        "linear_w": jax.random.uniform(
            k_w, (OUT_FEATURES, IN_FEATURES), jnp.float32, -bound, bound),
        "linear_b": jax.random.uniform(
            k_b, (OUT_FEATURES,), jnp.float32, -bound, bound),
        "bn_gamma": 1.0 + 0.1 * jax.random.normal(k_g, (OUT_FEATURES,), jnp.float32),
        "bn_beta": 0.1 * jax.random.normal(k_be, (OUT_FEATURES,), jnp.float32),
    }


def reference_forward(feat, params):
    """Pure-jnp reference with the literal PyTorch semantics (bias included)."""
    x = feat @ params["linear_w"].T + params["linear_b"]
    mean = jnp.mean(x, axis=0, keepdims=True)
    var = jnp.mean((x - mean) ** 2, axis=0, keepdims=True)  # biased, training-mode
    y = (x - mean) * jax.lax.rsqrt(var + BN_EPS) * params["bn_gamma"] + params["bn_beta"]
    return y, jnp.sum(y)


if __name__ == "__main__":
    key = jax.random.PRNGKey(0)
    k_param, k_feat, k_lab = jax.random.split(key, 3)

    params = init_params(k_param)

    batch = 8
    feat = jax.random.normal(k_feat, (batch, IN_FEATURES), jnp.float32)
    labels = jax.random.randint(k_lab, (batch,), 0, OUT_FEATURES)

    out = dummy_model_forward(feat, labels, params)
    jax.block_until_ready(out["logits"])
    jax.block_until_ready(out["loss"])

    # Correctness vs. pure-JAX reference of the original PyTorch forward.
    ref_logits, ref_loss = reference_forward(feat, params)
    assert out["logits"].shape == (batch, OUT_FEATURES)
    assert jnp.allclose(out["logits"], ref_logits, rtol=1e-5, atol=1e-5)
    assert jnp.allclose(out["loss"], ref_loss, rtol=1e-4, atol=1e-4)
    assert bool(jnp.isfinite(out["loss"]))

    # TODO(synk): BatchNorm1d running_mean/running_var buffer updates are not modeled
    # (forward-only, training-mode batch statistics).

    print("KERNEL_OK")
</pallas_src>

<mosaic_0001>
module attributes {stable_mosaic.version = 11 : i64} {
  func.func @dummy_model_kernel(%arg0: memref<8x5xf32, #tpu.memory_space<vmem>>, %arg1: memref<7x4xf32, #tpu.memory_space<vmem>>, %arg2: memref<8x4xf32, #tpu.memory_space<vmem>>, %arg3: memref<1xf32, #tpu.memory_space<smem>>) attributes {dimension_semantics = [], scalar_prefetch = 0 : i64, scratch_operands = 0 : i64, tpu.core_type = #tpu.core_type<tc>} {
    %c0 = arith.constant 0 : index
    %c0_0 = arith.constant 0 : index
    %0 = vector.load %arg0[%c0, %c0_0] : memref<8x5xf32, #tpu.memory_space<vmem>>, vector<8x5xf32>
    %1 = vector.extract_strided_slice %0 {offsets = [0, 0], sizes = [8, 1], strides = [1, 1]} : vector<8x5xf32> to vector<8x1xf32>
    %c0_1 = arith.constant 0 : index
    %c0_2 = arith.constant 0 : index
    %2 = vector.load %arg1[%c0_1, %c0_2] : memref<7x4xf32, #tpu.memory_space<vmem>>, vector<1x4xf32>
    %3 = vector.broadcast %1 : vector<8x1xf32> to vector<8x4xf32>
    %4 = vector.broadcast %2 : vector<1x4xf32> to vector<8x4xf32>
    %5 = arith.mulf %3, %4 : vector<8x4xf32>
    %6 = vector.extract_strided_slice %0 {offsets = [0, 1], sizes = [8, 1], strides = [1, 1]} : vector<8x5xf32> to vector<8x1xf32>
    %c1 = arith.constant 1 : index
    %c0_3 = arith.constant 0 : index
    %7 = vector.load %arg1[%c1, %c0_3] : memref<7x4xf32, #tpu.memory_space<vmem>>, vector<1x4xf32>
    %8 = vector.broadcast %6 : vector<8x1xf32> to vector<8x4xf32>
    %9 = vector.broadcast %7 : vector<1x4xf32> to vector<8x4xf32>
    %10 = arith.mulf %8, %9 : vector<8x4xf32>
    %11 = arith.addf %5, %10 : vector<8x4xf32>
    %12 = vector.extract_strided_slice %0 {offsets = [0, 2], sizes = [8, 1], strides = [1, 1]} : vector<8x5xf32> to vector<8x1xf32>
    %c2 = arith.constant 2 : index
    %c0_4 = arith.constant 0 : index
    %13 = vector.load %arg1[%c2, %c0_4] : memref<7x4xf32, #tpu.memory_space<vmem>>, vector<1x4xf32>
    %14 = vector.broadcast %12 : vector<8x1xf32> to vector<8x4xf32>
    %15 = vector.broadcast %13 : vector<1x4xf32> to vector<8x4xf32>
    %16 = arith.mulf %14, %15 : vector<8x4xf32>
    %17 = arith.addf %11, %16 : vector<8x4xf32>
    %18 = vector.extract_strided_slice %0 {offsets = [0, 3], sizes = [8, 1], strides = [1, 1]} : vector<8x5xf32> to vector<8x1xf32>
    %c3 = arith.constant 3 : index
    %c0_5 = arith.constant 0 : index
    %19 = vector.load %arg1[%c3, %c0_5] : memref<7x4xf32, #tpu.memory_space<vmem>>, vector<1x4xf32>
    %20 = vector.broadcast %18 : vector<8x1xf32> to vector<8x4xf32>
    %21 = vector.broadcast %19 : vector<1x4xf32> to vector<8x4xf32>
    %22 = arith.mulf %20, %21 : vector<8x4xf32>
    %23 = arith.addf %17, %22 : vector<8x4xf32>
    %24 = vector.extract_strided_slice %0 {offsets = [0, 4], sizes = [8, 1], strides = [1, 1]} : vector<8x5xf32> to vector<8x1xf32>
    %c4 = arith.constant 4 : index
    %c0_6 = arith.constant 0 : index
    %25 = vector.load %arg1[%c4, %c0_6] : memref<7x4xf32, #tpu.memory_space<vmem>>, vector<1x4xf32>
    %26 = vector.broadcast %24 : vector<8x1xf32> to vector<8x4xf32>
    %27 = vector.broadcast %25 : vector<1x4xf32> to vector<8x4xf32>
    %28 = arith.mulf %26, %27 : vector<8x4xf32>
    %29 = arith.addf %23, %28 : vector<8x4xf32>
    %c5 = arith.constant 5 : index
    %c0_7 = arith.constant 0 : index
    %30 = vector.load %arg1[%c5, %c0_7] : memref<7x4xf32, #tpu.memory_space<vmem>>, vector<1x4xf32>
    %c6 = arith.constant 6 : index
    %c0_8 = arith.constant 0 : index
    %31 = vector.load %arg1[%c6, %c0_8] : memref<7x4xf32, #tpu.memory_space<vmem>>, vector<1x4xf32>
    %cst = arith.constant dense<0.000000e+00> : vector<4xf32>
    %32 = vector.multi_reduction <add>, %29, %cst [0] : vector<8x4xf32> to vector<4xf32>
    %33 = vector.shape_cast %32 : vector<4xf32> to vector<1x4xf32>
    %cst_9 = arith.constant 1.250000e-01 : f32
    %34 = vector.broadcast %cst_9 : f32 to vector<1x4xf32>
    %35 = arith.mulf %33, %34 : vector<1x4xf32>
    %36 = vector.broadcast %35 : vector<1x4xf32> to vector<8x4xf32>
    %37 = arith.subf %29, %36 : vector<8x4xf32>
    %38 = arith.mulf %37, %37 : vector<8x4xf32>
    %cst_10 = arith.constant dense<0.000000e+00> : vector<4xf32>
    %39 = vector.multi_reduction <add>, %38, %cst_10 [0] : vector<8x4xf32> to vector<4xf32>
    %40 = vector.shape_cast %39 : vector<4xf32> to vector<1x4xf32>
    %cst_11 = arith.constant 1.250000e-01 : f32
    %41 = vector.broadcast %cst_11 : f32 to vector<1x4xf32>
    %42 = arith.mulf %40, %41 : vector<1x4xf32>
    %cst_12 = arith.constant 9.99999974E-6 : f32
    %43 = vector.broadcast %cst_12 : f32 to vector<1x4xf32>
    %44 = arith.addf %42, %43 : vector<1x4xf32>
    %45 = math.rsqrt %44 : vector<1x4xf32>
    %46 = arith.mulf %30, %45 : vector<1x4xf32>
    %47 = vector.broadcast %46 : vector<1x4xf32> to vector<8x4xf32>
    %48 = arith.mulf %37, %47 : vector<8x4xf32>
    %49 = vector.broadcast %31 : vector<1x4xf32> to vector<8x4xf32>
    %50 = arith.addf %48, %49 : vector<8x4xf32>
    %c0_13 = arith.constant 0 : index
    %c0_14 = arith.constant 0 : index
    %51 = vector.load %arg2[%c0_13, %c0_14] : memref<8x4xf32, #tpu.memory_space<vmem>>, vector<8x4xf32>
    tpu.vector_store %arg2[%c0_13, %c0_14], %50 {strides = array<i32>} : memref<8x4xf32, #tpu.memory_space<vmem>>, vector<8x4xf32>,
    %cst_15 = arith.constant 8.000000e+00 : f32
    %52 = vector.broadcast %cst_15 : f32 to vector<1x4xf32>
    %53 = arith.mulf %52, %35 : vector<1x4xf32>
    %54 = arith.subf %33, %53 : vector<1x4xf32>
    %55 = arith.mulf %54, %46 : vector<1x4xf32>
    %56 = vector.shape_cast %55 : vector<1x4xf32> to vector<1x1x4xf32>
    %cst_16 = arith.constant dense<0.000000e+00> : vector<1xf32>
    %57 = vector.multi_reduction <add>, %56, %cst_16 [1, 2] : vector<1x1x4xf32> to vector<1xf32>
    %58 = vector.shape_cast %57 : vector<1xf32> to vector<1x1x1xf32>
    %59 = vector.extract %58[0, 0, 0] : f32 from vector<1x1x1xf32>
    %60 = vector.shape_cast %31 : vector<1x4xf32> to vector<1x1x4xf32>
    %cst_17 = arith.constant dense<0.000000e+00> : vector<1xf32>
    %61 = vector.multi_reduction <add>, %60, %cst_17 [1, 2] : vector<1x1x4xf32> to vector<1xf32>
    %62 = vector.shape_cast %61 : vector<1xf32> to vector<1x1x1xf32>
    %63 = vector.extract %62[0, 0, 0] : f32 from vector<1x1x1xf32>
    %cst_18 = arith.constant 8.000000e+00 : f32
    %64 = arith.mulf %cst_18, %63 : f32
    %65 = arith.addf %59, %64 : f32
    %c0_19 = arith.constant 0 : index
    %66 = memref.load %arg3[%c0_19] : memref<1xf32, #tpu.memory_space<smem>>
    memref.store %65, %arg3[%c0_19] : memref<1xf32, #tpu.memory_space<smem>>
    return
  }
}

</mosaic_0001>

<llo_original>
// kernel: tpu_custom_call.1
$region0: #{tpu_custom_call.1}
  #allocation0 [shape = 'u32[]', space=smem, size = 0x4, offset = 0x4, fixed_abs, tag = 'smem constant byte address 0x4 - core index']
  #allocation1 [shape = 'u32[144,128]{1,0:T(1,128)}', space=vmem, size = 0x12000, scoped, tag = 'internal scratch']
  %s0 = inlined_call_operand.vmem [shape: f32[8,5], index: 0, kind: input, shape index: {}]
  %s1 = inlined_call_operand.vmem [shape: f32[7,4], index: 1, kind: input, shape index: {}]
  %s2 = inlined_call_operand.vmem [shape: f32[8,4], index: 2, kind: output, shape index: {0}]
  %s3 = inlined_call_operand.hbm [shape: f32[1], index: 3, kind: output, shape index: {1}]
  %4 = xla_tuple %s2, %s3
  %s5 = sld [smem:[#allocation0]]
  $region26: #{tpu_custom_call.1} parent=0
    _
  %s7 = ssub.s32 1, %s5
  %s8 = scalar_select 0, %s7, %s5
  $region1: #{tpu_custom_call.1} parent=0
    #allocation2 [shape = 'u8[512]{0}', space=smem, size = 0x200, scoped, tag = 'output window, operand 1, single buffered']
    #allocation3 [shape = 's32[1]{0}', space=sflag, size = 0x4, scoped, tag = 'scoped memory for tpu_custom_call.1']
    %9 = vsyncpa [#allocation3], 0
    // Predicated region
    $region2: #{tpu_custom_call.1} parent=1 // pred_check
      _
    $region3: #{tpu_custom_call.1} parent=1 // pred_check_branch
      %11 = sbr.rel (0) target = $region5
    $region4: #{tpu_custom_call.1} parent=1 // pred_region
      _
    $region5: #{tpu_custom_call.1} parent=1 // pred_fallthru
      _
    // Predicated region
    $region6: #{tpu_custom_call.1} parent=1 // pred_check
      _
    $region7: #{tpu_custom_call.1} parent=1 // pred_check_branch
      %13 = sbr.rel (0) target = $region9
    $region8: #{tpu_custom_call.1} parent=1 // pred_region
      _
    $region9: #{tpu_custom_call.1} parent=1 // pred_fallthru
      _
    %v14 = vld [vmem:[%s0] sm:$0xff]
    %v15 = vld [vmem:[%s1] sm:$0x1]
    %17 = vset.pattern.permute.xlu0 0
    %18 = vperm.xlu0 %17, %v14
    %v19 = vpop.permute.xlu0 %18
    %v21 = vlaneseq
    %v22 = vshrl.u32 %v21, 7
    %v23 = vsub.s32 0, %v22
    %v24 = vrot.slane %v15, %v23
    %v25 = vmul.f32 %v19, %v24
    %v26 = vld [vmem:[%s1 + $0x1] sm:$0x1]
    %27 = vset.pattern.permute.xlu0 1
    %28 = vperm.xlu0 %27, %v14
    %v29 = vpop.permute.xlu0 %28
    %v31 = vlaneseq
    %v32 = vshrl.u32 %v31, 7
    %v33 = vsub.s32 0, %v32
    %v34 = vrot.slane %v26, %v33
    %v35 = vmul.f32 %v29, %v34
    %v36 = vadd.f32 %v25, %v35
    %v37 = vld [vmem:[%s1 + $0x2] sm:$0x1]
    %38 = vset.pattern.permute.xlu0 2
    %39 = vperm.xlu0 %38, %v14
    %v40 = vpop.permute.xlu0 %39
    %v42 = vlaneseq
    %v43 = vshrl.u32 %v42, 7
    %v44 = vsub.s32 0, %v43
    %v45 = vrot.slane %v37, %v44
    %v46 = vmul.f32 %v40, %v45
    %v47 = vadd.f32 %v36, %v46
    %v48 = vld [vmem:[%s1 + $0x3] sm:$0x1]
    %49 = vset.pattern.permute.xlu0 3
    %50 = vperm.xlu0 %49, %v14
    %v51 = vpop.permute.xlu0 %50
    %v53 = vlaneseq
    %v54 = vshrl.u32 %v53, 7
    %v55 = vsub.s32 0, %v54
    %v56 = vrot.slane %v48, %v55
    %v57 = vmul.f32 %v51, %v56
    %v58 = vadd.f32 %v47, %v57
    %v59 = vld [vmem:[%s1 + $0x4] sm:$0x1]
    %60 = vset.pattern.permute.xlu0 4
    %61 = vperm.xlu0 %60, %v14
    %v62 = vpop.permute.xlu0 %61
    %v64 = vlaneseq
    %v65 = vshrl.u32 %v64, 7
    %v66 = vsub.s32 0, %v65
    %v67 = vrot.slane %v59, %v66
    %v68 = vmul.f32 %v62, %v67
    %v69 = vadd.f32 %v58, %v68
    %v70 = vld [vmem:[%s1 + $0x5] sm:$0x1]
    %v71 = vld [vmem:[%s1 + $0x6] sm:$0x1]
    %vm72 = vcmask 31744
    %v73 = vsel %vm72, %v69, 0.0
    %v74 = vrot.slane %v73, 4
    %v75 = vadd.f32 %v73, %v74
    %v76 = vrot.slane %v75, 2
    %v77 = vadd.f32 %v75, %v76
    %v78 = vrot.slane %v77, 1
    %v79 = vadd.f32 %v77, %v78
    %v80 = vmul.f32 %v79, 0.125
    %v81 = vsub.f32 %v69, %v80
    %v82 = vmul.f32 %v81, %v81
    %v83 = vsel %vm72, %v82, 0.0
    %v84 = vrot.slane %v83, 4
    %v85 = vadd.f32 %v83, %v84
    %v86 = vrot.slane %v85, 2
    %v87 = vadd.f32 %v85, %v86
    %v88 = vrot.slane %v87, 1
    %v89 = vadd.f32 %v87, %v88
    %v90 = vmul.f32 %v89, 0.125
    %v91 = vadd.f32 %v90, 1e-05
    %v92 = vrsqrt.pop %v91
    %v93 = vmul.f32 %v70, %v92
    %v94 = vlaneseq
    %v95 = vshrl.u32 %v94, 7
    %v96 = vsub.s32 0, %v95
    %v97 = vrot.slane %v93, %v96
    %v98 = vmul.f32 %v81, %v97
    %v99 = vlaneseq
    %v100 = vshrl.u32 %v99, 7
    %v101 = vsub.s32 0, %v100
    %v102 = vrot.slane %v71, %v101
    %v103 = vadd.f32 %v98, %v102
    %104 = vst.msk [vmem:[%s2] sm:$0xff] %vm72, %v103
    %v105 = vmul.f32 %v80, 8.0
    %v106 = vsub.f32 %v79, %v105
    %v107 = vmul.f32 %v106, %v93
    %vm108 = vcmask 24576
    %v109 = vsel %vm108, %v107, 0.0
    %110 = vadd.xlane.f32.xlu0 %v109
    %v111 = vpop.xlane.xlu0 %110
    %v112 = vrot.slane %v111, 4
    %v113 = vadd.f32 %v111, %v112
    %v114 = vrot.slane %v113, 2
    %v115 = vadd.f32 %v113, %v114
    %v116 = vrot.slane %v115, 1
    %v117 = vadd.f32 %v115, %v116
    %s118 = vtos %v117
    %v119 = vsel %vm108, %v71, 0.0
    %120 = vadd.xlane.f32.xlu0 %v119
    %v121 = vpop.xlane.xlu0 %120
    %v122 = vrot.slane %v121, 4
    %v123 = vadd.f32 %v121, %v122
    %v124 = vrot.slane %v123, 2
    %v125 = vadd.f32 %v123, %v124
    %v126 = vrot.slane %v125, 1
    %v127 = vadd.f32 %v125, %v126
    %s128 = vtos %v127
    %s129 = smul.f32 %s128, 8.0
    %s130 = sadd.f32 %s118, %s129
    %s131 = scalar_lea.smem [#allocation2], 0
    %132 = sst [smem:[%s131]] %s130
    // Predicated region
    $region10: #{tpu_custom_call.1} parent=1 // pred_check
      _
    $region11: #{tpu_custom_call.1} parent=1 // pred_check_branch
      %134 = sbr.rel (0) target = $region13
    $region12: #{tpu_custom_call.1} parent=1 // pred_region
      _
    $region13: #{tpu_custom_call.1} parent=1 // pred_fallthru
      _
    // Predicated region
    $region14: #{tpu_custom_call.1} parent=1 // pred_check
      _
    $region15: #{tpu_custom_call.1} parent=1 // pred_check_branch
      %136 = sbr.rel (0) target = $region17
    $region16: #{tpu_custom_call.1} parent=1 // pred_region
      %s138 = ssub.s32 16, 16
      %139 = vsyncadd [#allocation3], %s138
      %142 = dma.smem_to_hbm [#allocation2], 16, %s3, [#allocation3]
    $region17: #{tpu_custom_call.1} parent=1 // pred_fallthru
      _
    // Predicated region
    $region18: #{tpu_custom_call.1} parent=1 // pred_check
      _
    $region19: #{tpu_custom_call.1} parent=1 // pred_check_branch
      %144 = sbr.rel (0) target = $region21
    $region20: #{tpu_custom_call.1} parent=1 // pred_region
      _
    $region21: #{tpu_custom_call.1} parent=1 // pred_fallthru
      _
    // Predicated region
    $region22: #{tpu_custom_call.1} parent=1 // pred_check
      _
    $region23: #{tpu_custom_call.1} parent=1 // pred_check_branch
      %146 = sbr.rel (0) target = $region25
    $region24: #{tpu_custom_call.1} parent=1 // pred_region
      %147 = dma.done [#allocation3], 16
    $region25: #{tpu_custom_call.1} parent=1 // pred_fallthru
      _
    %148 = sfence
    %149 = vsyncpa [#allocation3], 1

</llo_original>
